<compile_context>
chip_gen: v7x
topology: tpu7x:2x2x1
jax: 0.10.0
libtpu: 0.0.40
codegen_flags: <defaults>
</compile_context>

<pallas_src>
import functools

import jax
import jax.numpy as jnp
from jax.experimental import pallas as pl
from jax.experimental.pallas import tpu as pltpu

LANE = 128
ROW = 16  # bf16 min tile is (16, 128): keep batch tiles multiples of 16


def _round_up(x, m):
    return ((x + m - 1) // m) * m


def _dqn_kernel(n_layers, x_ref, *refs):
    # refs = (w1, b1, w2, b2, ..., wN, bN, out_ref)
    out_ref = refs[-1]
    param_refs = refs[:-1]
    assert len(param_refs) == 2 * n_layers

    h = x_ref[...]                                # bf16 (tile_b, n_states)
    for i in range(n_layers):
        w = param_refs[2 * i][...]                # bf16 (in, out_pad)
        b = param_refs[2 * i + 1][...]            # f32  (1, out_pad)
        h = jnp.dot(h, w, preferred_element_type=jnp.float32) + b  # f32 acc
        if i < n_layers - 1:                      # ReLU on all but last layer
            h = jnp.maximum(h, 0.0).astype(jnp.bfloat16)
    out_ref[...] = h.astype(out_ref.dtype)        # bf16, lane-dense store


def prepare_dqn_params(weights, biases):
    """Pad layer output dims to 128 lanes and cast weights to bf16.

    Call once at init (and after parameter updates), NOT per forward call.
    Layer 0's input dim is left unpadded (= n_states); deeper layers' input
    dims are padded to 128 to match the previous layer's padded output.
    Zero padding is exact: padded hidden units see 0 + ReLU(0) = 0 and feed
    zero weight rows.
    """
    params = []
    for i, (w, b) in enumerate(zip(weights, biases)):
        in_f, out_f = w.shape
        in_p = in_f if i == 0 else _round_up(in_f, LANE)
        out_p = _round_up(out_f, LANE)
        w_pad = jnp.pad(w.astype(jnp.bfloat16),
                        ((0, in_p - in_f), (0, out_p - out_f)))
        b_pad = jnp.pad(b.astype(jnp.float32).reshape(1, -1),
                        ((0, 0), (0, out_p - out_f)))
        params.append(w_pad)
        params.append(b_pad)
    return tuple(params)


@functools.partial(jax.jit, static_argnames=("n_actions", "tile_b_max"))
def dqn_forward(x, params, *, n_actions, tile_b_max=2048):
    """Fused DQN MLP forward pass in one Pallas kernel.

    x:         (batch, n_states) float32 (cast to bf16 internally)
    params:    output of prepare_dqn_params (padded bf16 weights, f32 biases)
    n_actions: true (unpadded) number of actions
    returns:   (batch, n_actions) float32
    """
    n_layers = len(params) // 2
    batch, n_states = x.shape
    assert params[0].shape[0] == n_states, "layer-0 weight must match n_states"
    out_pad_dim = params[-2].shape[1]

    # --- batch tiling: multiples of 16; >= 2 grid steps when batch allows ---
    batch16 = _round_up(batch, ROW)
    if batch16 >= 2 * ROW:
        half = _round_up(-(-batch16 // 2), ROW)   # ceil(batch16/2) rounded to 16
        tile_b = min(tile_b_max, half)
    else:
        tile_b = batch16
    tile_b = max(ROW, _round_up(tile_b, ROW))
    batch_pad = _round_up(batch16, tile_b)
    grid = (batch_pad // tile_b,)

    # bf16 input stream; pad batch rows only (feature dim stays = n_states).
    x_bf = jnp.pad(x.astype(jnp.bfloat16), ((0, batch_pad - batch), (0, 0)))

    # VMEM guard for wide hidden layers (matters on v7x: 64 MiB VMEM).
    param_bytes = sum(int(p.size) * p.dtype.itemsize for p in params)
    big_params = param_bytes > (16 << 20)
    const_kwargs = dict(pipeline_mode=pl.Buffered(1)) if big_params else {}
    vmem_limit = (100 << 20) if big_params else None

    # BlockSpecs: x/out tiled over batch; weights/biases constant (resident).
    in_specs = [pl.BlockSpec((tile_b, n_states), lambda i: (i, 0))]
    for li in range(n_layers):
        in_specs.append(pl.BlockSpec(params[2 * li].shape,
                                     lambda i: (0, 0), **const_kwargs))
        in_specs.append(pl.BlockSpec(params[2 * li + 1].shape,
                                     lambda i: (0, 0), **const_kwargs))
    out_specs = pl.BlockSpec((tile_b, out_pad_dim), lambda i: (i, 0))

    out_pad = pl.pallas_call(
        functools.partial(_dqn_kernel, n_layers),
        out_shape=jax.ShapeDtypeStruct((batch_pad, out_pad_dim), jnp.bfloat16),
        grid=grid,
        in_specs=in_specs,
        out_specs=out_specs,
        compiler_params=pltpu.CompilerParams(
            dimension_semantics=("parallel",),
            vmem_limit_bytes=vmem_limit),
    )(x_bf, *params)

    # Strip padding + restore f32 (fused with the kernel output under jit).
    return out_pad[:batch, :n_actions].astype(jnp.float32)


def init_dqn_params(key, n_states, n_actions, n_hidden, n_layers):
    """Deterministic PyTorch-style init: U(-1/sqrt(fan_in), 1/sqrt(fan_in))."""
    assert n_layers in (3, 4, 5, 6)
    dims = [n_states] + [n_hidden] * (n_layers - 1) + [n_actions]
    weights, biases = [], []
    for i in range(n_layers):
        fan_in, fan_out = dims[i], dims[i + 1]
        key, kw, kb = jax.random.split(key, 3)
        bound = 1.0 / (fan_in ** 0.5)
        w = jax.random.uniform(kw, (fan_in, fan_out), jnp.float32,
                               minval=-bound, maxval=bound)
        b = jax.random.uniform(kb, (1, fan_out), jnp.float32,
                               minval=-bound, maxval=bound)
        weights.append(w)
        biases.append(b)
    return weights, biases


def dqn_reference(x, weights, biases):
    """Pure-JAX f32 reference for correctness checking."""
    h = x
    for i, (w, b) in enumerate(zip(weights, biases)):
        h = h @ w + b
        if i < len(weights) - 1:
            h = jnp.maximum(h, 0.0)
    return h


if __name__ == "__main__":
    key = jax.random.PRNGKey(0)

    # --- Test 1: tiny DQN-like shapes (single grid step) ---
    batch = 8
    n_states = 16
    n_actions = 4
    n_hidden = 32
    n_layers = 4

    key, kx = jax.random.split(key)
    x = jax.random.normal(kx, (batch, n_states), jnp.float32)
    weights, biases = init_dqn_params(key, n_states, n_actions,
                                      n_hidden, n_layers)
    params = prepare_dqn_params(weights, biases)   # cached across calls

    out = jax.block_until_ready(dqn_forward(x, params, n_actions=n_actions))
    ref = dqn_reference(x, weights, biases)
    assert out.shape == (batch, n_actions)
    # bf16 weights/activations/output with f32 accumulate -> loose tolerance.
    assert jnp.allclose(out, ref, atol=3e-2, rtol=3e-2)

    # --- Test 2: replay-batch sized call exercising batch tiling (grid > 1) ---
    batch2 = 300          # not a multiple of the tile; padding path exercised
    n_layers2 = 3
    key, kx2 = jax.random.split(key)
    x2 = jax.random.normal(kx2, (batch2, n_states), jnp.float32)
    weights2, biases2 = init_dqn_params(key, n_states, n_actions,
                                        n_hidden, n_layers2)
    params2 = prepare_dqn_params(weights2, biases2)

    out2 = jax.block_until_ready(
        dqn_forward(x2, params2, n_actions=n_actions, tile_b_max=128))
    ref2 = dqn_reference(x2, weights2, biases2)
    assert out2.shape == (batch2, n_actions)
    assert jnp.allclose(out2, ref2, atol=3e-2, rtol=3e-2)

    print("KERNEL_OK")
</pallas_src>

<mosaic_0001>
module attributes {stable_mosaic.version = 11 : i64} {
  func.func @_dqn_kernel(%arg0: i32, %arg1: memref<16x16xbf16, #tpu.memory_space<vmem>>, %arg2: memref<16x128xbf16, #tpu.memory_space<vmem>>, %arg3: memref<1x128xf32, #tpu.memory_space<vmem>>, %arg4: memref<128x128xbf16, #tpu.memory_space<vmem>>, %arg5: memref<1x128xf32, #tpu.memory_space<vmem>>, %arg6: memref<128x128xbf16, #tpu.memory_space<vmem>>, %arg7: memref<1x128xf32, #tpu.memory_space<vmem>>, %arg8: memref<128x128xbf16, #tpu.memory_space<vmem>>, %arg9: memref<1x128xf32, #tpu.memory_space<vmem>>, %arg10: memref<16x128xbf16, #tpu.memory_space<vmem>>) attributes {dimension_semantics = [#tpu.dimension_semantics<parallel>], iteration_bounds = array<i64: 1>, scalar_prefetch = 0 : i64, scratch_operands = 0 : i64, tpu.core_type = #tpu.core_type<tc>, window_params = [{transform_indices = @transform_0, window_bounds = array<i64: 16, 16>}, {pipeline_mode = #tpu.pipeline_mode<synchronous>, transform_indices = @transform_1, window_bounds = array<i64: 16, 128>}, {pipeline_mode = #tpu.pipeline_mode<synchronous>, transform_indices = @transform_2, window_bounds = array<i64: 1, 128>}, {pipeline_mode = #tpu.pipeline_mode<synchronous>, transform_indices = @transform_3, window_bounds = array<i64: 128, 128>}, {pipeline_mode = #tpu.pipeline_mode<synchronous>, transform_indices = @transform_4, window_bounds = array<i64: 1, 128>}, {pipeline_mode = #tpu.pipeline_mode<synchronous>, transform_indices = @transform_5, window_bounds = array<i64: 128, 128>}, {pipeline_mode = #tpu.pipeline_mode<synchronous>, transform_indices = @transform_6, window_bounds = array<i64: 1, 128>}, {pipeline_mode = #tpu.pipeline_mode<synchronous>, transform_indices = @transform_7, window_bounds = array<i64: 128, 128>}, {pipeline_mode = #tpu.pipeline_mode<synchronous>, transform_indices = @transform_8, window_bounds = array<i64: 1, 128>}, {transform_indices = @transform_9, window_bounds = array<i64: 16, 128>}]} {
    %c0 = arith.constant 0 : index
    %c0_0 = arith.constant 0 : index
    %0 = vector.load %arg1[%c0, %c0_0] : memref<16x16xbf16, #tpu.memory_space<vmem>>, vector<16x16xbf16>
    %c0_1 = arith.constant 0 : index
    %c0_2 = arith.constant 0 : index
    %1 = vector.load %arg2[%c0_1, %c0_2] : memref<16x128xbf16, #tpu.memory_space<vmem>>, vector<16x128xbf16>
    %c0_3 = arith.constant 0 : index
    %c0_4 = arith.constant 0 : index
    %2 = vector.load %arg3[%c0_3, %c0_4] : memref<1x128xf32, #tpu.memory_space<vmem>>, vector<1x128xf32>
    %cst = arith.constant dense<0.000000e+00> : vector<16x128xf32>
    %3 = tpu.matmul %0, %1, %cst {dimension_numbers = #tpu.dot_dimension_numbers<[1], [0], [0], [1], [0, 0, 1, 1], [], []>} : vector<16x16xbf16>, vector<16x128xbf16>, vector<16x128xf32> -> vector<16x128xf32>
    %4 = vector.broadcast %2 : vector<1x128xf32> to vector<16x128xf32>
    %5 = arith.addf %3, %4 : vector<16x128xf32>
    %cst_5 = arith.constant 0.000000e+00 : f32
    %6 = vector.broadcast %cst_5 : f32 to vector<16x128xf32>
    %7 = arith.maximumf %5, %6 : vector<16x128xf32>
    %8 = arith.truncf %7 : vector<16x128xf32> to vector<16x128xbf16>
    %c0_6 = arith.constant 0 : index
    %c0_7 = arith.constant 0 : index
    %9 = vector.load %arg4[%c0_6, %c0_7] : memref<128x128xbf16, #tpu.memory_space<vmem>>, vector<128x128xbf16>
    %c0_8 = arith.constant 0 : index
    %c0_9 = arith.constant 0 : index
    %10 = vector.load %arg5[%c0_8, %c0_9] : memref<1x128xf32, #tpu.memory_space<vmem>>, vector<1x128xf32>
    %cst_10 = arith.constant dense<0.000000e+00> : vector<16x128xf32>
    %11 = tpu.matmul %8, %9, %cst_10 {dimension_numbers = #tpu.dot_dimension_numbers<[1], [0], [0], [1], [0, 0, 1, 1], [], []>} : vector<16x128xbf16>, vector<128x128xbf16>, vector<16x128xf32> -> vector<16x128xf32>
    %12 = vector.broadcast %10 : vector<1x128xf32> to vector<16x128xf32>
    %13 = arith.addf %11, %12 : vector<16x128xf32>
    %cst_11 = arith.constant 0.000000e+00 : f32
    %14 = vector.broadcast %cst_11 : f32 to vector<16x128xf32>
    %15 = arith.maximumf %13, %14 : vector<16x128xf32>
    %16 = arith.truncf %15 : vector<16x128xf32> to vector<16x128xbf16>
    %c0_12 = arith.constant 0 : index
    %c0_13 = arith.constant 0 : index
    %17 = vector.load %arg6[%c0_12, %c0_13] : memref<128x128xbf16, #tpu.memory_space<vmem>>, vector<128x128xbf16>
    %c0_14 = arith.constant 0 : index
    %c0_15 = arith.constant 0 : index
    %18 = vector.load %arg7[%c0_14, %c0_15] : memref<1x128xf32, #tpu.memory_space<vmem>>, vector<1x128xf32>
    %cst_16 = arith.constant dense<0.000000e+00> : vector<16x128xf32>
    %19 = tpu.matmul %16, %17, %cst_16 {dimension_numbers = #tpu.dot_dimension_numbers<[1], [0], [0], [1], [0, 0, 1, 1], [], []>} : vector<16x128xbf16>, vector<128x128xbf16>, vector<16x128xf32> -> vector<16x128xf32>
    %20 = vector.broadcast %18 : vector<1x128xf32> to vector<16x128xf32>
    %21 = arith.addf %19, %20 : vector<16x128xf32>
    %cst_17 = arith.constant 0.000000e+00 : f32
    %22 = vector.broadcast %cst_17 : f32 to vector<16x128xf32>
    %23 = arith.maximumf %21, %22 : vector<16x128xf32>
    %24 = arith.truncf %23 : vector<16x128xf32> to vector<16x128xbf16>
    %c0_18 = arith.constant 0 : index
    %c0_19 = arith.constant 0 : index
    %25 = vector.load %arg8[%c0_18, %c0_19] : memref<128x128xbf16, #tpu.memory_space<vmem>>, vector<128x128xbf16>
    %c0_20 = arith.constant 0 : index
    %c0_21 = arith.constant 0 : index
    %26 = vector.load %arg9[%c0_20, %c0_21] : memref<1x128xf32, #tpu.memory_space<vmem>>, vector<1x128xf32>
    %cst_22 = arith.constant dense<0.000000e+00> : vector<16x128xf32>
    %27 = tpu.matmul %24, %25, %cst_22 {dimension_numbers = #tpu.dot_dimension_numbers<[1], [0], [0], [1], [0, 0, 1, 1], [], []>} : vector<16x128xbf16>, vector<128x128xbf16>, vector<16x128xf32> -> vector<16x128xf32>
    %28 = vector.broadcast %26 : vector<1x128xf32> to vector<16x128xf32>
    %29 = arith.addf %27, %28 : vector<16x128xf32>
    %30 = arith.truncf %29 : vector<16x128xf32> to vector<16x128xbf16>
    %c0_23 = arith.constant 0 : index
    %c0_24 = arith.constant 0 : index
    %31 = vector.load %arg10[%c0_23, %c0_24] : memref<16x128xbf16, #tpu.memory_space<vmem>>, vector<16x128xbf16>
    tpu.vector_store %arg10[%c0_23, %c0_24], %30 {strides = array<i32>} : memref<16x128xbf16, #tpu.memory_space<vmem>>, vector<16x128xbf16>,
    return
  }
  func.func @transform_0(%arg0: i32) -> (i32, i32) {
    %c0_i32 = arith.constant 0 : i32
    %c0_i32_0 = arith.constant 0 : i32
    return %arg0, %c0_i32 : i32, i32
  }
  func.func @transform_1(%arg0: i32) -> (i32, i32) {
    %c0_i32 = arith.constant 0 : i32
    %c0_i32_0 = arith.constant 0 : i32
    %c0_i32_1 = arith.constant 0 : i32
    return %c0_i32, %c0_i32_0 : i32, i32
  }
  func.func @transform_2(%arg0: i32) -> (i32, i32) {
    %c0_i32 = arith.constant 0 : i32
    %c0_i32_0 = arith.constant 0 : i32
    %c0_i32_1 = arith.constant 0 : i32
    return %c0_i32, %c0_i32_0 : i32, i32
  }
  func.func @transform_3(%arg0: i32) -> (i32, i32) {
    %c0_i32 = arith.constant 0 : i32
    %c0_i32_0 = arith.constant 0 : i32
    %c0_i32_1 = arith.constant 0 : i32
    return %c0_i32, %c0_i32_0 : i32, i32
  }
  func.func @transform_4(%arg0: i32) -> (i32, i32) {
    %c0_i32 = arith.constant 0 : i32
    %c0_i32_0 = arith.constant 0 : i32
    %c0_i32_1 = arith.constant 0 : i32
    return %c0_i32, %c0_i32_0 : i32, i32
  }
  func.func @transform_5(%arg0: i32) -> (i32, i32) {
    %c0_i32 = arith.constant 0 : i32
    %c0_i32_0 = arith.constant 0 : i32
    %c0_i32_1 = arith.constant 0 : i32
    return %c0_i32, %c0_i32_0 : i32, i32
  }
  func.func @transform_6(%arg0: i32) -> (i32, i32) {
    %c0_i32 = arith.constant 0 : i32
    %c0_i32_0 = arith.constant 0 : i32
    %c0_i32_1 = arith.constant 0 : i32
    return %c0_i32, %c0_i32_0 : i32, i32
  }
  func.func @transform_7(%arg0: i32) -> (i32, i32) {
    %c0_i32 = arith.constant 0 : i32
    %c0_i32_0 = arith.constant 0 : i32
    %c0_i32_1 = arith.constant 0 : i32
    return %c0_i32, %c0_i32_0 : i32, i32
  }
  func.func @transform_8(%arg0: i32) -> (i32, i32) {
    %c0_i32 = arith.constant 0 : i32
    %c0_i32_0 = arith.constant 0 : i32
    %c0_i32_1 = arith.constant 0 : i32
    return %c0_i32, %c0_i32_0 : i32, i32
  }
  func.func @transform_9(%arg0: i32) -> (i32, i32) {
    %c0_i32 = arith.constant 0 : i32
    %c0_i32_0 = arith.constant 0 : i32
    return %arg0, %c0_i32 : i32, i32
  }
}

</mosaic_0001>

<llo_original>
// kernel: dqn_forward.1
$region0: #{dqn_forward.1}
  #allocation0 [shape = 'u32[]', space=smem, size = 0x4, offset = 0x4, fixed_abs, tag = 'smem constant byte address 0x4 - core index']
  #allocation1 [shape = 'u32[144,128]{1,0:T(1,128)}', space=vmem, size = 0x12000, scoped, tag = 'internal scratch']
  %s0 = inlined_call_operand.vmem [shape: bf16[16,16], index: 0, kind: input, shape index: {}]
  %s1 = inlined_call_operand.vmem [shape: bf16[16,128], index: 1, kind: input, shape index: {}]
  %s2 = inlined_call_operand.vmem [shape: f32[1,128], index: 2, kind: input, shape index: {}]
  %s3 = inlined_call_operand.hbm [shape: bf16[128,128], index: 3, kind: input, shape index: {}]
  %s4 = inlined_call_operand.vmem [shape: f32[1,128], index: 4, kind: input, shape index: {}]
  %s5 = inlined_call_operand.hbm [shape: bf16[128,128], index: 5, kind: input, shape index: {}]
  %s6 = inlined_call_operand.vmem [shape: f32[1,128], index: 6, kind: input, shape index: {}]
  %s7 = inlined_call_operand.hbm [shape: bf16[128,128], index: 7, kind: input, shape index: {}]
  %s8 = inlined_call_operand.vmem [shape: f32[1,128], index: 8, kind: input, shape index: {}]
  %s9 = inlined_call_operand.vmem [shape: bf16[16,128], index: 9, kind: output, shape index: {}]
  %s10 = sld [smem:[#allocation0]]
  $region58: #{dqn_forward.1} parent=0
    _
  %s12 = ssub.s32 1, %s10
  %s13 = scalar_select 0, %s12, %s10
  $region1: #{dqn_forward.1} parent=0
    #allocation2 [shape = 'u8[32768]{0}', space=vmem, size = 0x8000, scoped, tag = 'input window, operand 3, single buffered']
    #allocation3 [shape = 's32[1]{0}', space=sflag, size = 0x4, scoped, tag = 'scoped memory for dqn_forward.1']
    #allocation4 [shape = 'u8[32768]{0}', space=vmem, size = 0x8000, scoped, tag = 'input window, operand 5, single buffered']
    #allocation5 [shape = 's32[1]{0}', space=sflag, size = 0x4, scoped, tag = 'scoped memory for dqn_forward.1']
    #allocation6 [shape = 'u8[32768]{0}', space=vmem, size = 0x8000, scoped, tag = 'input window, operand 7, single buffered']
    %14 = vsyncpa [#allocation3], 0
    %15 = vsyncpa [#allocation5], 0
    // Predicated region
    $region2: #{dqn_forward.1} parent=1 // pred_check
      _
    $region3: #{dqn_forward.1} parent=1 // pred_check_branch
      %17 = sbr.rel (0) target = $region5
    $region4: #{dqn_forward.1} parent=1 // pred_region
      _
    $region5: #{dqn_forward.1} parent=1 // pred_fallthru
      _
    // Predicated region
    $region6: #{dqn_forward.1} parent=1 // pred_check
      _
    $region7: #{dqn_forward.1} parent=1 // pred_check_branch
      %19 = sbr.rel (0) target = $region9
    $region8: #{dqn_forward.1} parent=1 // pred_region
      _
    $region9: #{dqn_forward.1} parent=1 // pred_fallthru
      _
    // Predicated region
    $region10: #{dqn_forward.1} parent=1 // pred_check
      _
    $region11: #{dqn_forward.1} parent=1 // pred_check_branch
      %21 = sbr.rel (0) target = $region13
    $region12: #{dqn_forward.1} parent=1 // pred_region
      _
    $region13: #{dqn_forward.1} parent=1 // pred_fallthru
      _
    // Predicated region
    $region14: #{dqn_forward.1} parent=1 // pred_check
      _
    $region15: #{dqn_forward.1} parent=1 // pred_check_branch
      %23 = sbr.rel (0) target = $region17
    $region16: #{dqn_forward.1} parent=1 // pred_region
      %s25 = ssub.s32 1024, 1024
      %26 = vsyncadd [#allocation3], %s25
      %s27 = sshll.u32 [#allocation2], 4
      %s28 = int_to_ptr.vmem [resolvable:$true] %s27
      %33 = dma.hbm_to_vmem [thread:$0]  %s3, 1024, %s28, [#allocation3], 64, 64, 4
    $region17: #{dqn_forward.1} parent=1 // pred_fallthru
      _
    // Predicated region
    $region18: #{dqn_forward.1} parent=1 // pred_check
      _
    $region19: #{dqn_forward.1} parent=1 // pred_check_branch
      %35 = sbr.rel (0) target = $region21
    $region20: #{dqn_forward.1} parent=1 // pred_region
      _
    $region21: #{dqn_forward.1} parent=1 // pred_fallthru
      _
    // Predicated region
    $region22: #{dqn_forward.1} parent=1 // pred_check
      _
    $region23: #{dqn_forward.1} parent=1 // pred_check_branch
      %37 = sbr.rel (0) target = $region25
    $region24: #{dqn_forward.1} parent=1 // pred_region
      %s39 = ssub.s32 1024, 1024
      %40 = vsyncadd [#allocation5], %s39
      %s41 = sshll.u32 [#allocation4], 4
      %s42 = int_to_ptr.vmem [resolvable:$true] %s41
      %47 = dma.hbm_to_vmem [thread:$0]  %s5, 1024, %s42, [#allocation5], 64, 64, 4
    $region25: #{dqn_forward.1} parent=1 // pred_fallthru
      _
    // Predicated region
    $region26: #{dqn_forward.1} parent=1 // pred_check
      _
    $region27: #{dqn_forward.1} parent=1 // pred_check_branch
      %49 = sbr.rel (0) target = $region29
    $region28: #{dqn_forward.1} parent=1 // pred_region
      _
    $region29: #{dqn_forward.1} parent=1 // pred_fallthru
      _
    // Predicated region
    $region30: #{dqn_forward.1} parent=1 // pred_check
      _
    $region31: #{dqn_forward.1} parent=1 // pred_check_branch
      %51 = sbr.rel (0) target = $region33
    $region32: #{dqn_forward.1} parent=1 // pred_region
      %s53 = ssub.s32 1024, 1024
      %54 = vsyncadd [#allocation5], %s53
      %s55 = sshll.u32 [#allocation6], 4
      %s56 = int_to_ptr.vmem [resolvable:$true] %s55
      %61 = dma.hbm_to_vmem [thread:$0]  %s7, 1024, %s56, [#allocation5], 64, 64, 4
    $region33: #{dqn_forward.1} parent=1 // pred_fallthru
      _
    // Predicated region
    $region34: #{dqn_forward.1} parent=1 // pred_check
      _
    $region35: #{dqn_forward.1} parent=1 // pred_check_branch
      %63 = sbr.rel (0) target = $region37
    $region36: #{dqn_forward.1} parent=1 // pred_region
      _
    $region37: #{dqn_forward.1} parent=1 // pred_fallthru
      _
    // Predicated region
    $region38: #{dqn_forward.1} parent=1 // pred_check
      _
    $region39: #{dqn_forward.1} parent=1 // pred_check_branch
      %65 = sbr.rel (0) target = $region41
    $region40: #{dqn_forward.1} parent=1 // pred_region
      %66 = dma.done [#allocation3], 1024
    $region41: #{dqn_forward.1} parent=1 // pred_fallthru
      _
    // Predicated region
    $region42: #{dqn_forward.1} parent=1 // pred_check
      _
    $region43: #{dqn_forward.1} parent=1 // pred_check_branch
      %68 = sbr.rel (0) target = $region45
    $region44: #{dqn_forward.1} parent=1 // pred_region
      %69 = dma.done [#allocation5], 1024
    $region45: #{dqn_forward.1} parent=1 // pred_fallthru
      _
    // Predicated region
    $region46: #{dqn_forward.1} parent=1 // pred_check
      _
    $region47: #{dqn_forward.1} parent=1 // pred_check_branch
      %71 = sbr.rel (0) target = $region49
    $region48: #{dqn_forward.1} parent=1 // pred_region
      %72 = dma.done [#allocation5], 1024
    $region49: #{dqn_forward.1} parent=1 // pred_fallthru
      _
    %v74 = vld [vmem:[%s0] sm:$0xf]
    %v75 = vld [vmem:[%s0 + $0x4] sm:$0xf]
    %v76 = vld [vmem:[%s1] sm:$0xf]
    %v77 = vld [vmem:[%s1 + $0x4] sm:$0xf]
    %v78 = vld [vmem:[%s2] sm:$0x1]
    %v80 = vlaneseq
    %v81 = vshrl.u32 %v80, 7
    %v82 = vsub.s32 0, %v81
    %v83 = vrot.slane %v78, %v82
    %v87 = vunpack.c.l.b16 %v74
    %v88 = vunpack.c.l.b16 %v75
    %v89 = vpack.c.b16 %v88, %v87
    %v92 = vunpack.c.l.b16 %v76
    %v93 = vunpack.c.l.b16 %v77
    %v94 = vpack.c.b16 %v93, %v92
    %vm96 = vcmask 130048
    %v98 = vsel %vm96, %v89, 0
    %100 = vmatprep.subr.bf16.mxu0 0
    %101 = vmatpush1.bf16.msra.mxu0 %v94
    %102 = vmatprep.subr.bf16.mxu0 0
    %103 = vmatpush1.bf16.msra.mxu0 0
    %104 = vmatprep.subr.bf16.mxu0 0
    %105 = vmatpush1.bf16.msra.mxu0 0
    %106 = vmatprep.subr.bf16.mxu0 0
    %107 = vmatpush1.bf16.msra.mxu0 0
    %108 = vmatprep.subr.bf16.mxu0 0
    %109 = vmatpush1.bf16.msra.mxu0 0
    %110 = vmatprep.subr.bf16.mxu0 0
    %111 = vmatpush1.bf16.msra.mxu0 0
    %112 = vmatprep.subr.bf16.mxu0 0
    %113 = vmatpush1.bf16.msra.mxu0 0
    %114 = vmatprep.subr.bf16.mxu0 0
    %115 = vmatpush1.bf16.msra.mxu0 0
    %116 = vmatprep.subr.bf16.mxu0 0
    %117 = vmatpush1.bf16.msra.mxu0 0
    %118 = vmatprep.subr.bf16.mxu0 0
    %119 = vmatpush1.bf16.msra.mxu0 0
    %120 = vmatprep.subr.bf16.mxu0 0
    %121 = vmatpush1.bf16.msra.mxu0 0
    %122 = vmatprep.subr.bf16.mxu0 0
    %123 = vmatpush1.bf16.msra.mxu0 0
    %124 = vmatprep.subr.bf16.mxu0 0
    %125 = vmatpush1.bf16.msra.mxu0 0
    %126 = vmatprep.subr.bf16.mxu0 0
    %127 = vmatpush1.bf16.msra.mxu0 0
    %128 = vmatprep.subr.bf16.mxu0 0
    %129 = vmatpush1.bf16.msra.mxu0 0
    %130 = vmatprep.subr.bf16.mxu0 0
    %131 = vmatpush1.bf16.msra.mxu0 0
    %132 = vmatprep.mubr.bf16.mxu0 0
    %133 = vmatmul.mubr.bf16.gmra.mrb[0].mxu0 %v98
    %v134 = vpop.f32.mrb[0].mxu0
    %v135 = vadd.f32 %v83, %v134
    %v136 = vpop.f32.mrb[0].mxu0
    %v137 = vpop.f32.mrb[0].mxu0
    %v138 = vadd.f32 %v83, %v137
    %v139 = vpop.f32.mrb[0].mxu0
    %140 = vdwg.mxu0
    %v141 = vmax.f32 %v135, 0.0
    %v142 = vmax.f32 %v138, 0.0
    %v143 = vpack.c.bf16 %v142, %v141
    %v144 = vld [vmem:[#allocation2] sm:$0xf]
    %v145 = vld [vmem:[#allocation2 + $0x4] sm:$0xf]
    %v146 = vld [vmem:[#allocation2 + $0x8] sm:$0xf]
    %v147 = vld [vmem:[#allocation2 + $0xc] sm:$0xf]
    %v148 = vld [vmem:[#allocation2 + $0x10] sm:$0xf]
    %v149 = vld [vmem:[#allocation2 + $0x14] sm:$0xf]
    %v150 = vld [vmem:[#allocation2 + $0x18] sm:$0xf]
    %v151 = vld [vmem:[#allocation2 + $0x1c] sm:$0xf]
    %v152 = vld [vmem:[#allocation2 + $0x20] sm:$0xf]
    %v153 = vld [vmem:[#allocation2 + $0x24] sm:$0xf]
    %v154 = vld [vmem:[#allocation2 + $0x28] sm:$0xf]
    %v155 = vld [vmem:[#allocation2 + $0x2c] sm:$0xf]
    %v156 = vld [vmem:[#allocation2 + $0x30] sm:$0xf]
    %v157 = vld [vmem:[#allocation2 + $0x34] sm:$0xf]
    %v158 = vld [vmem:[#allocation2 + $0x38] sm:$0xf]
    %v159 = vld [vmem:[#allocation2 + $0x3c] sm:$0xf]
    %v160 = vld [vmem:[%s4] sm:$0x1]
    %v162 = vlaneseq
    %v163 = vshrl.u32 %v162, 7
    %v164 = vsub.s32 0, %v163
    %v165 = vrot.slane %v160, %v164
    %v183 = vunpack.c.l.b16 %v144
    %v184 = vunpack.c.l.b16 %v145
    %v185 = vunpack.c.l.b16 %v146
    %v186 = vunpack.c.l.b16 %v147
    %v187 = vunpack.c.l.b16 %v148
    %v188 = vunpack.c.l.b16 %v149
    %v189 = vunpack.c.l.b16 %v150
    %v190 = vunpack.c.l.b16 %v151
    %v191 = vunpack.c.l.b16 %v152
    %v192 = vunpack.c.l.b16 %v153
    %v193 = vunpack.c.l.b16 %v154
    %v194 = vunpack.c.l.b16 %v155
    %v195 = vunpack.c.l.b16 %v156
    %v196 = vunpack.c.l.b16 %v157
    %v197 = vunpack.c.l.b16 %v158
    %v198 = vunpack.c.l.b16 %v159
    %v199 = vpack.c.b16 %v184, %v183
    %v200 = vpack.c.b16 %v186, %v185
    %v201 = vpack.c.b16 %v188, %v187
    %v202 = vpack.c.b16 %v190, %v189
    %v203 = vpack.c.b16 %v192, %v191
    %v204 = vpack.c.b16 %v194, %v193
    %v205 = vpack.c.b16 %v196, %v195
    %v206 = vpack.c.b16 %v198, %v197
    %215 = vmatprep.subr.bf16.mxu0 0
    %216 = vmatpush1.bf16.msra.mxu0 %v199
    %217 = vmatprep.subr.bf16.mxu0 0
    %218 = vmatpush1.bf16.msra.mxu0 %v200
    %219 = vmatprep.subr.bf16.mxu0 0
    %220 = vmatpush1.bf16.msra.mxu0 %v201
    %221 = vmatprep.subr.bf16.mxu0 0
    %222 = vmatpush1.bf16.msra.mxu0 %v202
    %223 = vmatprep.subr.bf16.mxu0 0
    %224 = vmatpush1.bf16.msra.mxu0 %v203
    %225 = vmatprep.subr.bf16.mxu0 0
    %226 = vmatpush1.bf16.msra.mxu0 %v204
    %227 = vmatprep.subr.bf16.mxu0 0
    %228 = vmatpush1.bf16.msra.mxu0 %v205
    %229 = vmatprep.subr.bf16.mxu0 0
    %230 = vmatpush1.bf16.msra.mxu0 %v206
    %231 = vmatprep.subr.bf16.mxu0 0
    %232 = vmatpush1.bf16.msra.mxu0 0
    %233 = vmatprep.subr.bf16.mxu0 0
    %234 = vmatpush1.bf16.msra.mxu0 0
    %235 = vmatprep.subr.bf16.mxu0 0
    %236 = vmatpush1.bf16.msra.mxu0 0
    %237 = vmatprep.subr.bf16.mxu0 0
    %238 = vmatpush1.bf16.msra.mxu0 0
    %239 = vmatprep.subr.bf16.mxu0 0
    %240 = vmatpush1.bf16.msra.mxu0 0
    %241 = vmatprep.subr.bf16.mxu0 0
    %242 = vmatpush1.bf16.msra.mxu0 0
    %243 = vmatprep.subr.bf16.mxu0 0
    %244 = vmatpush1.bf16.msra.mxu0 0
    %245 = vmatprep.subr.bf16.mxu0 0
    %246 = vmatpush1.bf16.msra.mxu0 0
    %247 = vmatprep.mubr.bf16.mxu0 0
    %248 = vmatmul.mubr.bf16.gmra.mrb[0].mxu0 %v143
    %v249 = vpop.f32.mrb[0].mxu0
    %v250 = vadd.f32 %v165, %v249
    %v251 = vpop.f32.mrb[0].mxu0
    %v252 = vpop.f32.mrb[0].mxu0
    %v253 = vadd.f32 %v165, %v252
    %v254 = vpop.f32.mrb[0].mxu0
    %255 = vdwg.mxu0
    %v256 = vmax.f32 %v250, 0.0
    %v257 = vmax.f32 %v253, 0.0
    %v258 = vpack.c.bf16 %v257, %v256
    %v259 = vld [vmem:[#allocation4] sm:$0xf]
    %v260 = vld [vmem:[#allocation4 + $0x4] sm:$0xf]
    %v261 = vld [vmem:[#allocation4 + $0x8] sm:$0xf]
    %v262 = vld [vmem:[#allocation4 + $0xc] sm:$0xf]
    %v263 = vld [vmem:[#allocation4 + $0x10] sm:$0xf]
    %v264 = vld [vmem:[#allocation4 + $0x14] sm:$0xf]
    %v265 = vld [vmem:[#allocation4 + $0x18] sm:$0xf]
    %v266 = vld [vmem:[#allocation4 + $0x1c] sm:$0xf]
    %v267 = vld [vmem:[#allocation4 + $0x20] sm:$0xf]
    %v268 = vld [vmem:[#allocation4 + $0x24] sm:$0xf]
    %v269 = vld [vmem:[#allocation4 + $0x28] sm:$0xf]
    %v270 = vld [vmem:[#allocation4 + $0x2c] sm:$0xf]
    %v271 = vld [vmem:[#allocation4 + $0x30] sm:$0xf]
    %v272 = vld [vmem:[#allocation4 + $0x34] sm:$0xf]
    %v273 = vld [vmem:[#allocation4 + $0x38] sm:$0xf]
    %v274 = vld [vmem:[#allocation4 + $0x3c] sm:$0xf]
    %v275 = vld [vmem:[%s6] sm:$0x1]
    %v277 = vlaneseq
    %v278 = vshrl.u32 %v277, 7
    %v279 = vsub.s32 0, %v278
    %v280 = vrot.slane %v275, %v279
    %v298 = vunpack.c.l.b16 %v259
    %v299 = vunpack.c.l.b16 %v260
    %v300 = vunpack.c.l.b16 %v261
    %v301 = vunpack.c.l.b16 %v262
    %v302 = vunpack.c.l.b16 %v263
    %v303 = vunpack.c.l.b16 %v264
    %v304 = vunpack.c.l.b16 %v265
    %v305 = vunpack.c.l.b16 %v266
    %v306 = vunpack.c.l.b16 %v267
    %v307 = vunpack.c.l.b16 %v268
    %v308 = vunpack.c.l.b16 %v269
    %v309 = vunpack.c.l.b16 %v270
    %v310 = vunpack.c.l.b16 %v271
    %v311 = vunpack.c.l.b16 %v272
    %v312 = vunpack.c.l.b16 %v273
    %v313 = vunpack.c.l.b16 %v274
    %v314 = vpack.c.b16 %v299, %v298
    %v315 = vpack.c.b16 %v301, %v300
    %v316 = vpack.c.b16 %v303, %v302
    %v317 = vpack.c.b16 %v305, %v304
    %v318 = vpack.c.b16 %v307, %v306
    %v319 = vpack.c.b16 %v309, %v308
    %v320 = vpack.c.b16 %v311, %v310
    %v321 = vpack.c.b16 %v313, %v312
    %330 = vmatprep.subr.bf16.mxu0 0
    %331 = vmatpush1.bf16.msra.mxu0 %v314
    %332 = vmatprep.subr.bf16.mxu0 0
    %333 = vmatpush1.bf16.msra.mxu0 %v315
    %334 = vmatprep.subr.bf16.mxu0 0
    %335 = vmatpush1.bf16.msra.mxu0 %v316
    %336 = vmatprep.subr.bf16.mxu0 0
    %337 = vmatpush1.bf16.msra.mxu0 %v317
    %338 = vmatprep.subr.bf16.mxu0 0
    %339 = vmatpush1.bf16.msra.mxu0 %v318
    %340 = vmatprep.subr.bf16.mxu0 0
    %341 = vmatpush1.bf16.msra.mxu0 %v319
    %342 = vmatprep.subr.bf16.mxu0 0
    %343 = vmatpush1.bf16.msra.mxu0 %v320
    %344 = vmatprep.subr.bf16.mxu0 0
    %345 = vmatpush1.bf16.msra.mxu0 %v321
    %346 = vmatprep.subr.bf16.mxu0 0
    %347 = vmatpush1.bf16.msra.mxu0 0
    %348 = vmatprep.subr.bf16.mxu0 0
    %349 = vmatpush1.bf16.msra.mxu0 0
    %350 = vmatprep.subr.bf16.mxu0 0
    %351 = vmatpush1.bf16.msra.mxu0 0
    %352 = vmatprep.subr.bf16.mxu0 0
    %353 = vmatpush1.bf16.msra.mxu0 0
    %354 = vmatprep.subr.bf16.mxu0 0
    %355 = vmatpush1.bf16.msra.mxu0 0
    %356 = vmatprep.subr.bf16.mxu0 0
    %357 = vmatpush1.bf16.msra.mxu0 0
    %358 = vmatprep.subr.bf16.mxu0 0
    %359 = vmatpush1.bf16.msra.mxu0 0
    %360 = vmatprep.subr.bf16.mxu0 0
    %361 = vmatpush1.bf16.msra.mxu0 0
    %362 = vmatprep.mubr.bf16.mxu0 0
    %363 = vmatmul.mubr.bf16.gmra.mrb[0].mxu0 %v258
    %v364 = vpop.f32.mrb[0].mxu0
    %v365 = vadd.f32 %v280, %v364
    %v366 = vpop.f32.mrb[0].mxu0
    %v367 = vpop.f32.mrb[0].mxu0
    %v368 = vadd.f32 %v280, %v367
    %v369 = vpop.f32.mrb[0].mxu0
    %370 = vdwg.mxu0
    %v371 = vmax.f32 %v365, 0.0
    %v372 = vmax.f32 %v368, 0.0
    %v373 = vpack.c.bf16 %v372, %v371
    %v374 = vld [vmem:[#allocation6] sm:$0xf]
    %v375 = vld [vmem:[#allocation6 + $0x4] sm:$0xf]
    %v376 = vld [vmem:[#allocation6 + $0x8] sm:$0xf]
    %v377 = vld [vmem:[#allocation6 + $0xc] sm:$0xf]
    %v378 = vld [vmem:[#allocation6 + $0x10] sm:$0xf]
    %v379 = vld [vmem:[#allocation6 + $0x14] sm:$0xf]
    %v380 = vld [vmem:[#allocation6 + $0x18] sm:$0xf]
    %v381 = vld [vmem:[#allocation6 + $0x1c] sm:$0xf]
    %v382 = vld [vmem:[#allocation6 + $0x20] sm:$0xf]
    %v383 = vld [vmem:[#allocation6 + $0x24] sm:$0xf]
    %v384 = vld [vmem:[#allocation6 + $0x28] sm:$0xf]
    %v385 = vld [vmem:[#allocation6 + $0x2c] sm:$0xf]
    %v386 = vld [vmem:[#allocation6 + $0x30] sm:$0xf]
    %v387 = vld [vmem:[#allocation6 + $0x34] sm:$0xf]
    %v388 = vld [vmem:[#allocation6 + $0x38] sm:$0xf]
    %v389 = vld [vmem:[#allocation6 + $0x3c] sm:$0xf]
    %v390 = vld [vmem:[%s8] sm:$0x1]
    %v392 = vlaneseq
    %v393 = vshrl.u32 %v392, 7
    %v394 = vsub.s32 0, %v393
    %v395 = vrot.slane %v390, %v394
    %v413 = vunpack.c.l.b16 %v374
    %v414 = vunpack.c.l.b16 %v375
    %v415 = vunpack.c.l.b16 %v376
    %v416 = vunpack.c.l.b16 %v377
    %v417 = vunpack.c.l.b16 %v378
    %v418 = vunpack.c.l.b16 %v379
    %v419 = vunpack.c.l.b16 %v380
    %v420 = vunpack.c.l.b16 %v381
    %v421 = vunpack.c.l.b16 %v382
    %v422 = vunpack.c.l.b16 %v383
    %v423 = vunpack.c.l.b16 %v384
    %v424 = vunpack.c.l.b16 %v385
    %v425 = vunpack.c.l.b16 %v386
    %v426 = vunpack.c.l.b16 %v387
    %v427 = vunpack.c.l.b16 %v388
    %v428 = vunpack.c.l.b16 %v389
    %v429 = vpack.c.b16 %v414, %v413
    %v430 = vpack.c.b16 %v416, %v415
    %v431 = vpack.c.b16 %v418, %v417
    %v432 = vpack.c.b16 %v420, %v419
    %v433 = vpack.c.b16 %v422, %v421
    %v434 = vpack.c.b16 %v424, %v423
    %v435 = vpack.c.b16 %v426, %v425
    %v436 = vpack.c.b16 %v428, %v427
    %445 = vmatprep.subr.bf16.mxu0 0
    %446 = vmatpush1.bf16.msra.mxu0 %v429
    %447 = vmatprep.subr.bf16.mxu0 0
    %448 = vmatpush1.bf16.msra.mxu0 %v430
    %449 = vmatprep.subr.bf16.mxu0 0
    %450 = vmatpush1.bf16.msra.mxu0 %v431
    %451 = vmatprep.subr.bf16.mxu0 0
    %452 = vmatpush1.bf16.msra.mxu0 %v432
    %453 = vmatprep.subr.bf16.mxu0 0
    %454 = vmatpush1.bf16.msra.mxu0 %v433
    %455 = vmatprep.subr.bf16.mxu0 0
    %456 = vmatpush1.bf16.msra.mxu0 %v434
    %457 = vmatprep.subr.bf16.mxu0 0
    %458 = vmatpush1.bf16.msra.mxu0 %v435
    %459 = vmatprep.subr.bf16.mxu0 0
    %460 = vmatpush1.bf16.msra.mxu0 %v436
    %461 = vmatprep.subr.bf16.mxu0 0
    %462 = vmatpush1.bf16.msra.mxu0 0
    %463 = vmatprep.subr.bf16.mxu0 0
    %464 = vmatpush1.bf16.msra.mxu0 0
    %465 = vmatprep.subr.bf16.mxu0 0
    %466 = vmatpush1.bf16.msra.mxu0 0
    %467 = vmatprep.subr.bf16.mxu0 0
    %468 = vmatpush1.bf16.msra.mxu0 0
    %469 = vmatprep.subr.bf16.mxu0 0
    %470 = vmatpush1.bf16.msra.mxu0 0
    %471 = vmatprep.subr.bf16.mxu0 0
    %472 = vmatpush1.bf16.msra.mxu0 0
    %473 = vmatprep.subr.bf16.mxu0 0
    %474 = vmatpush1.bf16.msra.mxu0 0
    %475 = vmatprep.subr.bf16.mxu0 0
    %476 = vmatpush1.bf16.msra.mxu0 0
    %477 = vmatprep.mubr.bf16.mxu0 0
    %478 = vmatmul.mubr.bf16.gmra.mrb[0].mxu0 %v373
    %v479 = vpop.f32.mrb[0].mxu0
    %v480 = vadd.f32 %v395, %v479
    %v481 = vpop.f32.mrb[0].mxu0
    %v482 = vpop.f32.mrb[0].mxu0
    %v483 = vadd.f32 %v395, %v482
    %v484 = vpop.f32.mrb[0].mxu0
    %485 = vdwg.mxu0
    %v486 = vpack.c.bf16 %v483, %v480
    %v488 = vunpack.c.l.b16 %v486
    %v489 = vunpack.c.h.b16 %v486
    %v490 = vpack.c.b16 %v488, %v488
    %v491 = vpack.c.b16 %v489, %v489
    %494 = vst [vmem:[%s9] sm:$0xf] %v490
    %495 = vst [vmem:[%s9 + $0x4] sm:$0xf] %v491
    // Predicated region
    $region50: #{dqn_forward.1} parent=1 // pred_check
      _
    $region51: #{dqn_forward.1} parent=1 // pred_check_branch
      %497 = sbr.rel (0) target = $region53
    $region52: #{dqn_forward.1} parent=1 // pred_region
      _
    $region53: #{dqn_forward.1} parent=1 // pred_fallthru
      _
    // Predicated region
    $region54: #{dqn_forward.1} parent=1 // pred_check
      _
    $region55: #{dqn_forward.1} parent=1 // pred_check_branch
      %499 = sbr.rel (0) target = $region57
    $region56: #{dqn_forward.1} parent=1 // pred_region
      _
    $region57: #{dqn_forward.1} parent=1 // pred_fallthru
      _
    %500 = vsyncpa [#allocation3], 1
    %501 = vsyncpa [#allocation5], 1

</llo_original>
